<compile_context>
chip_gen: v7x
topology: tpu7x:2x2x1
jax: 0.10.0
libtpu: 0.0.40
codegen_flags: <defaults>
</compile_context>

<pallas_src>
import functools

import jax
import jax.numpy as jnp
from jax.experimental import pallas as pl
from jax.experimental.pallas import tpu as pltpu

LANE = 128


def _modulator_kernel(*refs, num_layers, lp, has_wx):
    """One batch tile: layer loop fully unrolled, recurrent state in vregs."""
    if has_wx:
        z_ref, wz_ref, b_ref, wx_ref, h_ref = refs
    else:
        z_ref, wz_ref, b_ref, h_ref = refs
        wx_ref = None

    z = z_ref[...].astype(jnp.float32)                         # (TB, dim_in)

    # z-term + bias for every layer in a single (TB,K) @ (K, L*LP) MXU pass.
    c = jnp.dot(z, wz_ref[...], preferred_element_type=jnp.float32)
    c = c + b_ref[...]                                         # (TB, L*LP)

    # Layer 0: relu(W0 @ z + b0). Padding lanes of c are zero -> relu keeps 0.
    x = jnp.maximum(c[:, 0:lp], 0.0)                           # (TB, LP)
    h_ref[:, 0:lp] = x.astype(h_ref.dtype)                     # unmasked 128-lane vst

    # Layers i > 0: relu(Wx_i @ x + (Wz_i @ z + b_i)) == relu(x @ Wx_i^T + c_i).
    # Wx is zero-padded to (LP, LP), so padding lanes of x stay exactly 0.
    for i in range(1, num_layers):
        ci = c[:, i * lp:(i + 1) * lp]                         # whole-vreg, 128-aligned
        x = jnp.maximum(
            jnp.dot(x, wx_ref[i - 1], preferred_element_type=jnp.float32) + ci,
            0.0)
        h_ref[:, i * lp:(i + 1) * lp] = x.astype(h_ref.dtype)  # per-layer store


def pack_modulator_params(weights, biases):
    """One-time repacking (hoisted out of the per-call hot path).

    weights[i]: (dim_hidden, fan_in_i), biases[i]: (dim_hidden,).
    Returns ((wz, b_cat, wx), meta) with each layer's columns padded to a
    128-lane boundary so all in-kernel slices/stores are lane-aligned.
    """
    num_layers = len(weights)
    dim_hidden, dim_in = weights[0].shape
    lp = ((dim_hidden + LANE - 1) // LANE) * LANE              # per-layer lane width
    pad = lp - dim_hidden

    wz_parts, wx_parts, b_parts = [], [], []
    for i, (w, b) in enumerate(zip(weights, biases)):
        if i == 0:
            wz_i = w.T                                         # (dim_in, H)
        else:
            wx_i = w[:, :dim_hidden].T                         # (H, H)
            wx_parts.append(jnp.pad(wx_i, ((0, pad), (0, pad))))
            wz_i = w[:, dim_hidden:].T                         # (dim_in, H)
        wz_parts.append(jnp.pad(wz_i, ((0, 0), (0, pad))))     # (dim_in, LP)
        b_parts.append(jnp.pad(b, (0, pad)))                   # (LP,)

    wz = jnp.concatenate(wz_parts, axis=1)                     # (dim_in, L*LP)
    b_cat = jnp.concatenate(b_parts)[None, :]                  # (1, L*LP)
    wx = jnp.stack(wx_parts) if wx_parts else None             # (L-1, LP, LP) or None
    meta = dict(num_layers=num_layers, dim_in=dim_in,
                dim_hidden=dim_hidden, lp=lp)
    return (wz, b_cat, wx), meta


@functools.partial(jax.jit,
                   static_argnames=("num_layers", "dim_hidden", "lp", "tb"))
def modulator_forward_packed(z, wz, b_cat, wx, *, num_layers, dim_hidden, lp,
                             tb=128):
    """z: (dim_in,) or (B, dim_in). Returns tuple of per-layer activations."""
    single = (z.ndim == 1)
    z2 = z[None, :] if single else z
    b_size, dim_in = z2.shape

    # Pad batch up to a multiple of the batch tile (tb=128 matches the MXU;
    # use tb=256 on v6e/v7x for the 2x256 array if batches are large).
    bp = ((b_size + tb - 1) // tb) * tb
    if bp != b_size:
        z2 = jnp.pad(z2, ((0, bp - b_size), (0, 0)))

    has_wx = wx is not None
    kernel = functools.partial(_modulator_kernel, num_layers=num_layers,
                               lp=lp, has_wx=has_wx)

    in_specs = [
        pl.BlockSpec((tb, dim_in), lambda i: (i, 0)),                    # z tile
        pl.BlockSpec((dim_in, num_layers * lp), lambda i: (0, 0)),       # wz (resident)
        pl.BlockSpec((1, num_layers * lp), lambda i: (0, 0)),            # bias (resident)
    ]
    args = [z2, wz, b_cat]
    if has_wx:
        in_specs.append(pl.BlockSpec((num_layers - 1, lp, lp),
                                     lambda i: (0, 0, 0)))               # wx (resident)
        args.append(wx)

    h = pl.pallas_call(
        kernel,
        out_shape=jax.ShapeDtypeStruct((bp, num_layers * lp), z.dtype),
        grid=(bp // tb,),
        in_specs=in_specs,
        out_specs=pl.BlockSpec((tb, num_layers * lp), lambda i: (i, 0)),
        compiler_params=pltpu.CompilerParams(
            dimension_semantics=("parallel",)),
    )(*args)

    # Strip batch padding and lane padding in the wrapper.
    h = h[:b_size].reshape(b_size, num_layers, lp)[:, :, :dim_hidden]
    if single:
        return tuple(h[0, i] for i in range(num_layers))
    return tuple(h[:, i] for i in range(num_layers))


def modulator_reference(z, weights, biases):
    """Pure-JAX mirror of the PyTorch forward (supports 1-D or batched z)."""
    x = z
    hiddens = []
    for w, b in zip(weights, biases):
        x = jnp.maximum(x @ w.T + b, 0.0)
        hiddens.append(x)
        x = jnp.concatenate([x, z], axis=-1)
    return tuple(hiddens)


def init_modulator_params(key, dim_in, dim_hidden, num_layers):
    """Deterministic synthetic init mimicking nn.Linear's uniform(-1/sqrt(fan_in), ...)."""
    weights, biases = [], []
    for ind in range(num_layers):
        fan_in = dim_in if ind == 0 else dim_hidden + dim_in
        key, kw, kb = jax.random.split(key, 3)
        bound = 1.0 / (fan_in ** 0.5)
        weights.append(jax.random.uniform(
            kw, (dim_hidden, fan_in), jnp.float32, -bound, bound))
        biases.append(jax.random.uniform(
            kb, (dim_hidden,), jnp.float32, -bound, bound))
    return weights, biases


if __name__ == "__main__":
    dim_in, dim_hidden, num_layers = 32, 32, 3

    key = jax.random.PRNGKey(0)
    key, kz, kzb = jax.random.split(key, 3)
    weights, biases = init_modulator_params(key, dim_in, dim_hidden, num_layers)

    # Pack weights once (outside the hot path).
    (wz, b_cat, wx), meta = pack_modulator_params(weights, biases)
    fwd = functools.partial(
        modulator_forward_packed, wz=wz, b_cat=b_cat, wx=wx,
        num_layers=meta["num_layers"], dim_hidden=meta["dim_hidden"],
        lp=meta["lp"], tb=128)

    # 1) Single latent — exact original module semantics (1-D z).
    z1 = jax.random.normal(kz, (dim_in,), jnp.float32)
    out1 = jax.block_until_ready(fwd(z1))
    ref1 = modulator_reference(z1, weights, biases)
    for o, r in zip(out1, ref1):
        assert o.shape == (dim_hidden,)
        assert jnp.allclose(o, r, atol=1e-5, rtol=1e-5), "single-z mismatch"

    # 2) Batched latents — the structural perf win (grid over batch tiles).
    batch = 64
    zb = jax.random.normal(kzb, (batch, dim_in), jnp.float32)
    outb = jax.block_until_ready(fwd(zb))
    refb = modulator_reference(zb, weights, biases)
    for o, r in zip(outb, refb):
        assert o.shape == (batch, dim_hidden)
        assert jnp.allclose(o, r, atol=1e-5, rtol=1e-5), "batched-z mismatch"

    print("KERNEL_OK")
</pallas_src>

<mosaic_0001>
module attributes {stable_mosaic.version = 11 : i64} {
  func.func @_modulator_kernel(%arg0: i32, %arg1: memref<128x32xf32, #tpu.memory_space<vmem>>, %arg2: memref<32x384xf32, #tpu.memory_space<vmem>>, %arg3: memref<1x384xf32, #tpu.memory_space<vmem>>, %arg4: memref<2x128x128xf32, #tpu.memory_space<vmem>>, %arg5: memref<128x384xf32, #tpu.memory_space<vmem>>) attributes {dimension_semantics = [#tpu.dimension_semantics<parallel>], iteration_bounds = array<i64: 1>, scalar_prefetch = 0 : i64, scratch_operands = 0 : i64, tpu.core_type = #tpu.core_type<tc>, window_params = [{transform_indices = @transform_0, window_bounds = array<i64: 128, 32>}, {pipeline_mode = #tpu.pipeline_mode<synchronous>, transform_indices = @transform_1, window_bounds = array<i64: 32, 384>}, {pipeline_mode = #tpu.pipeline_mode<synchronous>, transform_indices = @transform_2, window_bounds = array<i64: 1, 384>}, {pipeline_mode = #tpu.pipeline_mode<synchronous>, transform_indices = @transform_3, window_bounds = array<i64: 2, 128, 128>}, {transform_indices = @transform_4, window_bounds = array<i64: 128, 384>}]} {
    %c0 = arith.constant 0 : index
    %c0_0 = arith.constant 0 : index
    %0 = vector.load %arg1[%c0, %c0_0] : memref<128x32xf32, #tpu.memory_space<vmem>>, vector<128x32xf32>
    %c0_1 = arith.constant 0 : index
    %c0_2 = arith.constant 0 : index
    %1 = vector.load %arg2[%c0_1, %c0_2] : memref<32x384xf32, #tpu.memory_space<vmem>>, vector<32x384xf32>
    %cst = arith.constant dense<0.000000e+00> : vector<128x384xf32>
    %2 = tpu.matmul %0, %1, %cst {dimension_numbers = #tpu.dot_dimension_numbers<[1], [0], [0], [1], [0, 0, 1, 1], [], []>} : vector<128x32xf32>, vector<32x384xf32>, vector<128x384xf32> -> vector<128x384xf32>
    %c0_3 = arith.constant 0 : index
    %c0_4 = arith.constant 0 : index
    %3 = vector.load %arg3[%c0_3, %c0_4] : memref<1x384xf32, #tpu.memory_space<vmem>>, vector<1x384xf32>
    %4 = vector.broadcast %3 : vector<1x384xf32> to vector<128x384xf32>
    %5 = arith.addf %2, %4 : vector<128x384xf32>
    %6 = vector.extract_strided_slice %5 {offsets = [0, 0], sizes = [128, 128], strides = [1, 1]} : vector<128x384xf32> to vector<128x128xf32>
    %cst_5 = arith.constant 0.000000e+00 : f32
    %7 = vector.broadcast %cst_5 : f32 to vector<128x128xf32>
    %8 = arith.maximumf %6, %7 : vector<128x128xf32>
    %c0_6 = arith.constant 0 : index
    %c0_7 = arith.constant 0 : index
    %9 = vector.load %arg5[%c0_6, %c0_7] : memref<128x384xf32, #tpu.memory_space<vmem>>, vector<128x128xf32>
    tpu.vector_store %arg5[%c0_6, %c0_7], %8 {strides = array<i32>} : memref<128x384xf32, #tpu.memory_space<vmem>>, vector<128x128xf32>,
    %10 = vector.extract_strided_slice %5 {offsets = [0, 128], sizes = [128, 128], strides = [1, 1]} : vector<128x384xf32> to vector<128x128xf32>
    %c0_8 = arith.constant 0 : index
    %c0_9 = arith.constant 0 : index
    %c0_10 = arith.constant 0 : index
    %11 = vector.load %arg4[%c0_8, %c0_9, %c0_10] : memref<2x128x128xf32, #tpu.memory_space<vmem>>, vector<1x128x128xf32>
    %12 = vector.shape_cast %11 : vector<1x128x128xf32> to vector<128x128xf32>
    %cst_11 = arith.constant dense<0.000000e+00> : vector<128x128xf32>
    %13 = tpu.matmul %8, %12, %cst_11 {dimension_numbers = #tpu.dot_dimension_numbers<[1], [0], [0], [1], [0, 0, 1, 1], [], []>} : vector<128x128xf32>, vector<128x128xf32>, vector<128x128xf32> -> vector<128x128xf32>
    %14 = arith.addf %13, %10 : vector<128x128xf32>
    %cst_12 = arith.constant 0.000000e+00 : f32
    %15 = vector.broadcast %cst_12 : f32 to vector<128x128xf32>
    %16 = arith.maximumf %14, %15 : vector<128x128xf32>
    %c0_13 = arith.constant 0 : index
    %c128 = arith.constant 128 : index
    %17 = vector.load %arg5[%c0_13, %c128] : memref<128x384xf32, #tpu.memory_space<vmem>>, vector<128x128xf32>
    tpu.vector_store %arg5[%c0_13, %c128], %16 {strides = array<i32>} : memref<128x384xf32, #tpu.memory_space<vmem>>, vector<128x128xf32>,
    %18 = vector.extract_strided_slice %5 {offsets = [0, 256], sizes = [128, 128], strides = [1, 1]} : vector<128x384xf32> to vector<128x128xf32>
    %c1 = arith.constant 1 : index
    %c0_14 = arith.constant 0 : index
    %c0_15 = arith.constant 0 : index
    %19 = vector.load %arg4[%c1, %c0_14, %c0_15] : memref<2x128x128xf32, #tpu.memory_space<vmem>>, vector<1x128x128xf32>
    %20 = vector.shape_cast %19 : vector<1x128x128xf32> to vector<128x128xf32>
    %cst_16 = arith.constant dense<0.000000e+00> : vector<128x128xf32>
    %21 = tpu.matmul %16, %20, %cst_16 {dimension_numbers = #tpu.dot_dimension_numbers<[1], [0], [0], [1], [0, 0, 1, 1], [], []>} : vector<128x128xf32>, vector<128x128xf32>, vector<128x128xf32> -> vector<128x128xf32>
    %22 = arith.addf %21, %18 : vector<128x128xf32>
    %cst_17 = arith.constant 0.000000e+00 : f32
    %23 = vector.broadcast %cst_17 : f32 to vector<128x128xf32>
    %24 = arith.maximumf %22, %23 : vector<128x128xf32>
    %c0_18 = arith.constant 0 : index
    %c256 = arith.constant 256 : index
    %25 = vector.load %arg5[%c0_18, %c256] : memref<128x384xf32, #tpu.memory_space<vmem>>, vector<128x128xf32>
    tpu.vector_store %arg5[%c0_18, %c256], %24 {strides = array<i32>} : memref<128x384xf32, #tpu.memory_space<vmem>>, vector<128x128xf32>,
    return
  }
  func.func @transform_0(%arg0: i32) -> (i32, i32) {
    %c0_i32 = arith.constant 0 : i32
    %c0_i32_0 = arith.constant 0 : i32
    return %arg0, %c0_i32 : i32, i32
  }
  func.func @transform_1(%arg0: i32) -> (i32, i32) {
    %c0_i32 = arith.constant 0 : i32
    %c0_i32_0 = arith.constant 0 : i32
    %c0_i32_1 = arith.constant 0 : i32
    return %c0_i32, %c0_i32_0 : i32, i32
  }
  func.func @transform_2(%arg0: i32) -> (i32, i32) {
    %c0_i32 = arith.constant 0 : i32
    %c0_i32_0 = arith.constant 0 : i32
    %c0_i32_1 = arith.constant 0 : i32
    return %c0_i32, %c0_i32_0 : i32, i32
  }
  func.func @transform_3(%arg0: i32) -> (i32, i32, i32) {
    %c0_i32 = arith.constant 0 : i32
    %c0_i32_0 = arith.constant 0 : i32
    %c0_i32_1 = arith.constant 0 : i32
    %c0_i32_2 = arith.constant 0 : i32
    return %c0_i32, %c0_i32_0, %c0_i32_1 : i32, i32, i32
  }
  func.func @transform_4(%arg0: i32) -> (i32, i32) {
    %c0_i32 = arith.constant 0 : i32
    %c0_i32_0 = arith.constant 0 : i32
    return %arg0, %c0_i32 : i32, i32
  }
}

</mosaic_0001>

<llo_original>
// kernel: modulator_forward_packed.1
$region0: #{modulator_forward_packed.1}
  #allocation0 [shape = 'u32[]', space=smem, size = 0x4, offset = 0x4, fixed_abs, tag = 'smem constant byte address 0x4 - core index']
  #allocation1 [shape = 'u32[144,128]{1,0:T(1,128)}', space=vmem, size = 0x12000, scoped, tag = 'internal scratch']
  %s0 = inlined_call_operand.vmem [shape: f32[128,32], index: 0, kind: input, shape index: {}]
  %s1 = inlined_call_operand.vmem [shape: f32[32,384], index: 1, kind: input, shape index: {}]
  %s2 = inlined_call_operand.vmem [shape: f32[1,384], index: 2, kind: input, shape index: {}]
  %s3 = inlined_call_operand.hbm [shape: f32[2,128,128], index: 3, kind: input, shape index: {}]
  %s4 = inlined_call_operand.vmem [shape: f32[128,384], index: 4, kind: output, shape index: {}]
  %s5 = sld [smem:[#allocation0]]
  $region30: #{modulator_forward_packed.1} parent=0
    _
  %s7 = ssub.s32 1, %s5
  %s8 = scalar_select 0, %s7, %s5
  $region1: #{modulator_forward_packed.1} parent=0
    #allocation2 [shape = 'u8[131072]{0}', space=vmem, size = 0x20000, scoped, tag = 'input window, operand 3, single buffered']
    #allocation3 [shape = 's32[1]{0}', space=sflag, size = 0x4, scoped, tag = 'scoped memory for modulator_forward_packed.1']
    %9 = vsyncpa [#allocation3], 0
    // Predicated region
    $region2: #{modulator_forward_packed.1} parent=1 // pred_check
      _
    $region3: #{modulator_forward_packed.1} parent=1 // pred_check_branch
      %11 = sbr.rel (0) target = $region5
    $region4: #{modulator_forward_packed.1} parent=1 // pred_region
      _
    $region5: #{modulator_forward_packed.1} parent=1 // pred_fallthru
      _
    // Predicated region
    $region6: #{modulator_forward_packed.1} parent=1 // pred_check
      _
    $region7: #{modulator_forward_packed.1} parent=1 // pred_check_branch
      %13 = sbr.rel (0) target = $region9
    $region8: #{modulator_forward_packed.1} parent=1 // pred_region
      _
    $region9: #{modulator_forward_packed.1} parent=1 // pred_fallthru
      _
    // Predicated region
    $region10: #{modulator_forward_packed.1} parent=1 // pred_check
      _
    $region11: #{modulator_forward_packed.1} parent=1 // pred_check_branch
      %15 = sbr.rel (0) target = $region13
    $region12: #{modulator_forward_packed.1} parent=1 // pred_region
      _
    $region13: #{modulator_forward_packed.1} parent=1 // pred_fallthru
      _
    // Predicated region
    $region14: #{modulator_forward_packed.1} parent=1 // pred_check
      _
    $region15: #{modulator_forward_packed.1} parent=1 // pred_check_branch
      %17 = sbr.rel (0) target = $region17
    $region16: #{modulator_forward_packed.1} parent=1 // pred_region
      %s19 = ssub.s32 4096, 4096
      %20 = vsyncadd [#allocation3], %s19
      %s21 = sshll.u32 [#allocation2], 4
      %s22 = int_to_ptr.vmem [resolvable:$true] %s21
      %27 = dma.hbm_to_vmem [thread:$0]  %s3, 4096, %s22, [#allocation3], 128, 128, 8
    $region17: #{modulator_forward_packed.1} parent=1 // pred_fallthru
      _
    // Predicated region
    $region18: #{modulator_forward_packed.1} parent=1 // pred_check
      _
    $region19: #{modulator_forward_packed.1} parent=1 // pred_check_branch
      %29 = sbr.rel (0) target = $region21
    $region20: #{modulator_forward_packed.1} parent=1 // pred_region
      %30 = dma.done [#allocation3], 4096
    $region21: #{modulator_forward_packed.1} parent=1 // pred_fallthru
      _
    %v31 = vld [vmem:[%s0] sm:$0xff]
    %v32 = vld [vmem:[%s0 + $0x8] sm:$0xff]
    %v33 = vld [vmem:[%s0 + $0x10] sm:$0xff]
    %v34 = vld [vmem:[%s0 + $0x18] sm:$0xff]
    %v35 = vld [vmem:[%s0 + $0x20] sm:$0xff]
    %v36 = vld [vmem:[%s0 + $0x28] sm:$0xff]
    %v37 = vld [vmem:[%s0 + $0x30] sm:$0xff]
    %v38 = vld [vmem:[%s0 + $0x38] sm:$0xff]
    %v39 = vld [vmem:[%s0 + $0x40] sm:$0xff]
    %v40 = vld [vmem:[%s0 + $0x48] sm:$0xff]
    %v41 = vld [vmem:[%s0 + $0x50] sm:$0xff]
    %v42 = vld [vmem:[%s0 + $0x58] sm:$0xff]
    %v43 = vld [vmem:[%s0 + $0x60] sm:$0xff]
    %v44 = vld [vmem:[%s0 + $0x68] sm:$0xff]
    %v45 = vld [vmem:[%s0 + $0x70] sm:$0xff]
    %v46 = vld [vmem:[%s0 + $0x78] sm:$0xff]
    %v47 = vld [vmem:[%s1] sm:$0xff]
    %v48 = vld [vmem:[%s1 + $0x8] sm:$0xff]
    %v49 = vld [vmem:[%s1 + $0x10] sm:$0xff]
    %v50 = vld [vmem:[%s1 + $0x18] sm:$0xff]
    %v51 = vld [vmem:[%s1 + $0x20] sm:$0xff]
    %v52 = vld [vmem:[%s1 + $0x28] sm:$0xff]
    %v53 = vld [vmem:[%s1 + $0x30] sm:$0xff]
    %v54 = vld [vmem:[%s1 + $0x38] sm:$0xff]
    %v55 = vld [vmem:[%s1 + $0x40] sm:$0xff]
    %v56 = vld [vmem:[%s1 + $0x48] sm:$0xff]
    %v57 = vld [vmem:[%s1 + $0x50] sm:$0xff]
    %v58 = vld [vmem:[%s1 + $0x58] sm:$0xff]
    %v59 = vld [vmem:[%s2] sm:$0x7]
    %v61 = vlaneseq
    %v62 = vshrl.u32 %v61, 7
    %v63 = vsub.s32 0, %v62
    %v64 = vrot.slane %v59, %v63
    %v65 = vlaneseq
    %v66 = vshrl.u32 %v65, 7
    %v67 = vsub.s32 1, %v66
    %v68 = vrot.slane %v59, %v67
    %v69 = vlaneseq
    %v70 = vshrl.u32 %v69, 7
    %v71 = vsub.s32 2, %v70
    %v72 = vrot.slane %v59, %v71
    %vm76 = vcmask 261120
    %v78 = vsel %vm76, %v31, 0
    %v81 = vsel %vm76, %v32, 0
    %v84 = vsel %vm76, %v33, 0
    %v87 = vsel %vm76, %v34, 0
    %v90 = vsel %vm76, %v35, 0
    %v93 = vsel %vm76, %v36, 0
    %v96 = vsel %vm76, %v37, 0
    %v99 = vsel %vm76, %v38, 0
    %v102 = vsel %vm76, %v39, 0
    %v105 = vsel %vm76, %v40, 0
    %v108 = vsel %vm76, %v41, 0
    %v111 = vsel %vm76, %v42, 0
    %v114 = vsel %vm76, %v43, 0
    %v117 = vsel %vm76, %v44, 0
    %v120 = vsel %vm76, %v45, 0
    %v123 = vsel %vm76, %v46, 0
    %125 = vmatprep.subr.mxu0 %v48
    %126 = vmatpush1.msra.mxu0 %v47
    %127 = vmatprep.subr.mxu0 %v51
    %128 = vmatpush1.msra.mxu0 %v50
    %129 = vmatprep.subr.mxu0 %v54
    %130 = vmatpush1.msra.mxu0 %v53
    %131 = vmatprep.subr.mxu0 %v57
    %132 = vmatpush1.msra.mxu0 %v56
    %133 = vmatprep.subr.mxu0 0.0
    %134 = vmatpush1.msra.mxu0 0.0
    %135 = vmatprep.subr.mxu0 0.0
    %136 = vmatpush1.msra.mxu0 0.0
    %137 = vmatprep.subr.mxu0 0.0
    %138 = vmatpush1.msra.mxu0 0.0
    %139 = vmatprep.subr.mxu0 0.0
    %140 = vmatpush1.msra.mxu0 0.0
    %141 = vmatprep.subr.mxu0 0.0
    %142 = vmatpush1.msra.mxu0 0.0
    %143 = vmatprep.subr.mxu0 0.0
    %144 = vmatpush1.msra.mxu0 0.0
    %145 = vmatprep.subr.mxu0 0.0
    %146 = vmatpush1.msra.mxu0 0.0
    %147 = vmatprep.subr.mxu0 0.0
    %148 = vmatpush1.msra.mxu0 0.0
    %149 = vmatprep.subr.mxu0 0.0
    %150 = vmatpush1.msra.mxu0 0.0
    %151 = vmatprep.subr.mxu0 0.0
    %152 = vmatpush1.msra.mxu0 0.0
    %153 = vmatprep.subr.mxu0 0.0
    %154 = vmatpush1.msra.mxu0 0.0
    %155 = vmatprep.subr.mxu0 0.0
    %156 = vmatpush1.msra.mxu0 0.0
    %157 = vmatprep.subr.mxu0 0.0
    %158 = vmatpush1.msra.mxu0 0.0
    %159 = vmatprep.subr.mxu0 0.0
    %160 = vmatpush1.msra.mxu0 0.0
    %161 = vmatprep.subr.mxu0 0.0
    %162 = vmatpush1.msra.mxu0 0.0
    %163 = vmatprep.subr.mxu0 0.0
    %164 = vmatpush1.msra.mxu0 0.0
    %165 = vmatprep.subr.mxu0 0.0
    %166 = vmatpush1.msra.mxu0 0.0
    %167 = vmatprep.subr.mxu0 0.0
    %168 = vmatpush1.msra.mxu0 0.0
    %169 = vmatprep.subr.mxu0 0.0
    %170 = vmatpush1.msra.mxu0 0.0
    %171 = vmatprep.subr.mxu0 0.0
    %172 = vmatpush1.msra.mxu0 0.0
    %173 = vmatprep.subr.mxu0 0.0
    %174 = vmatpush1.msra.mxu0 0.0
    %175 = vmatprep.subr.mxu0 0.0
    %176 = vmatpush1.msra.mxu0 0.0
    %177 = vmatprep.subr.mxu0 0.0
    %178 = vmatpush1.msra.mxu0 0.0
    %179 = vmatprep.subr.mxu0 0.0
    %180 = vmatpush1.msra.mxu0 0.0
    %181 = vmatprep.subr.mxu0 0.0
    %182 = vmatpush1.msra.mxu0 0.0
    %183 = vmatprep.subr.mxu0 0.0
    %184 = vmatpush1.msra.mxu0 0.0
    %185 = vmatprep.subr.mxu0 0.0
    %186 = vmatpush1.msra.mxu0 0.0
    %187 = vmatprep.subr.mxu0 0.0
    %188 = vmatpush1.msra.mxu0 0.0
    %189 = vmatprep.mubr.f32.mxu0 0.0
    %190 = vmatmul.mubr.f32.gmra.mrb[0].mxu0 %v78
    %v191 = vpop.f32.mrb[0].mxu0
    %v192 = vadd.f32 %v64, %v191
    %v193 = vpop.f32.mrb[0].mxu0
    %v194 = vadd.f32 %v68, %v193
    %195 = vmatprep.mubr.f32.mxu0 0.0
    %196 = vmatmul.mubr.f32.gmra.mrb[0].mxu0 %v81
    %v197 = vpop.f32.mrb[0].mxu0
    %v198 = vadd.f32 %v64, %v197
    %v199 = vpop.f32.mrb[0].mxu0
    %v200 = vadd.f32 %v68, %v199
    %201 = vmatprep.mubr.f32.mxu0 0.0
    %202 = vmatmul.mubr.f32.gmra.mrb[0].mxu0 %v84
    %v203 = vpop.f32.mrb[0].mxu0
    %v204 = vadd.f32 %v64, %v203
    %v205 = vpop.f32.mrb[0].mxu0
    %v206 = vadd.f32 %v68, %v205
    %207 = vmatprep.mubr.f32.mxu0 0.0
    %208 = vmatmul.mubr.f32.gmra.mrb[0].mxu0 %v87
    %v209 = vpop.f32.mrb[0].mxu0
    %v210 = vadd.f32 %v64, %v209
    %v211 = vpop.f32.mrb[0].mxu0
    %v212 = vadd.f32 %v68, %v211
    %213 = vmatprep.mubr.f32.mxu0 0.0
    %214 = vmatmul.mubr.f32.gmra.mrb[0].mxu0 %v90
    %v215 = vpop.f32.mrb[0].mxu0
    %v216 = vadd.f32 %v64, %v215
    %v217 = vpop.f32.mrb[0].mxu0
    %v218 = vadd.f32 %v68, %v217
    %219 = vmatprep.mubr.f32.mxu0 0.0
    %220 = vmatmul.mubr.f32.gmra.mrb[0].mxu0 %v93
    %v221 = vpop.f32.mrb[0].mxu0
    %v222 = vadd.f32 %v64, %v221
    %v223 = vpop.f32.mrb[0].mxu0
    %v224 = vadd.f32 %v68, %v223
    %225 = vmatprep.mubr.f32.mxu0 0.0
    %226 = vmatmul.mubr.f32.gmra.mrb[0].mxu0 %v96
    %v227 = vpop.f32.mrb[0].mxu0
    %v228 = vadd.f32 %v64, %v227
    %v229 = vpop.f32.mrb[0].mxu0
    %v230 = vadd.f32 %v68, %v229
    %231 = vmatprep.mubr.f32.mxu0 0.0
    %232 = vmatmul.mubr.f32.gmra.mrb[0].mxu0 %v99
    %v233 = vpop.f32.mrb[0].mxu0
    %v234 = vadd.f32 %v64, %v233
    %v235 = vpop.f32.mrb[0].mxu0
    %v236 = vadd.f32 %v68, %v235
    %237 = vmatprep.mubr.f32.mxu0 0.0
    %238 = vmatmul.mubr.f32.gmra.mrb[0].mxu0 %v102
    %v239 = vpop.f32.mrb[0].mxu0
    %v240 = vadd.f32 %v64, %v239
    %v241 = vpop.f32.mrb[0].mxu0
    %v242 = vadd.f32 %v68, %v241
    %243 = vmatprep.mubr.f32.mxu0 0.0
    %244 = vmatmul.mubr.f32.gmra.mrb[0].mxu0 %v105
    %v245 = vpop.f32.mrb[0].mxu0
    %v246 = vadd.f32 %v64, %v245
    %v247 = vpop.f32.mrb[0].mxu0
    %v248 = vadd.f32 %v68, %v247
    %249 = vmatprep.mubr.f32.mxu0 0.0
    %250 = vmatmul.mubr.f32.gmra.mrb[0].mxu0 %v108
    %v251 = vpop.f32.mrb[0].mxu0
    %v252 = vadd.f32 %v64, %v251
    %v253 = vpop.f32.mrb[0].mxu0
    %v254 = vadd.f32 %v68, %v253
    %255 = vmatprep.mubr.f32.mxu0 0.0
    %256 = vmatmul.mubr.f32.gmra.mrb[0].mxu0 %v111
    %v257 = vpop.f32.mrb[0].mxu0
    %v258 = vadd.f32 %v64, %v257
    %v259 = vpop.f32.mrb[0].mxu0
    %v260 = vadd.f32 %v68, %v259
    %261 = vmatprep.mubr.f32.mxu0 0.0
    %262 = vmatmul.mubr.f32.gmra.mrb[0].mxu0 %v114
    %v263 = vpop.f32.mrb[0].mxu0
    %v264 = vadd.f32 %v64, %v263
    %v265 = vpop.f32.mrb[0].mxu0
    %v266 = vadd.f32 %v68, %v265
    %267 = vmatprep.mubr.f32.mxu0 0.0
    %268 = vmatmul.mubr.f32.gmra.mrb[0].mxu0 %v117
    %v269 = vpop.f32.mrb[0].mxu0
    %v270 = vadd.f32 %v64, %v269
    %v271 = vpop.f32.mrb[0].mxu0
    %v272 = vadd.f32 %v68, %v271
    %273 = vmatprep.mubr.f32.mxu0 0.0
    %274 = vmatmul.mubr.f32.gmra.mrb[0].mxu0 %v120
    %v275 = vpop.f32.mrb[0].mxu0
    %v276 = vadd.f32 %v64, %v275
    %v277 = vpop.f32.mrb[0].mxu0
    %v278 = vadd.f32 %v68, %v277
    %279 = vmatprep.mubr.f32.mxu0 0.0
    %280 = vmatmul.mubr.f32.gmra.mrb[0].mxu0 %v123
    %v281 = vpop.f32.mrb[0].mxu0
    %v282 = vadd.f32 %v64, %v281
    %v283 = vpop.f32.mrb[0].mxu0
    %v284 = vadd.f32 %v68, %v283
    %285 = vdwg.mxu0
    %286 = vmatprep.subr.mxu0 0.0
    %287 = vmatpush1.msra.mxu0 %v49
    %288 = vmatprep.subr.mxu0 0.0
    %289 = vmatpush1.msra.mxu0 %v52
    %290 = vmatprep.subr.mxu0 0.0
    %291 = vmatpush1.msra.mxu0 %v55
    %292 = vmatprep.subr.mxu0 0.0
    %293 = vmatpush1.msra.mxu0 %v58
    %294 = vmatprep.subr.mxu0 0.0
    %295 = vmatpush1.msra.mxu0 0.0
    %296 = vmatprep.subr.mxu0 0.0
    %297 = vmatpush1.msra.mxu0 0.0
    %298 = vmatprep.subr.mxu0 0.0
    %299 = vmatpush1.msra.mxu0 0.0
    %300 = vmatprep.subr.mxu0 0.0
    %301 = vmatpush1.msra.mxu0 0.0
    %302 = vmatprep.subr.mxu0 0.0
    %303 = vmatpush1.msra.mxu0 0.0
    %304 = vmatprep.subr.mxu0 0.0
    %305 = vmatpush1.msra.mxu0 0.0
    %306 = vmatprep.subr.mxu0 0.0
    %307 = vmatpush1.msra.mxu0 0.0
    %308 = vmatprep.subr.mxu0 0.0
    %309 = vmatpush1.msra.mxu0 0.0
    %310 = vmatprep.subr.mxu0 0.0
    %311 = vmatpush1.msra.mxu0 0.0
    %312 = vmatprep.subr.mxu0 0.0
    %313 = vmatpush1.msra.mxu0 0.0
    %314 = vmatprep.subr.mxu0 0.0
    %315 = vmatpush1.msra.mxu0 0.0
    %316 = vmatprep.subr.mxu0 0.0
    %317 = vmatpush1.msra.mxu0 0.0
    %318 = vmatprep.subr.mxu0 0.0
    %319 = vmatpush1.msra.mxu0 0.0
    %320 = vmatprep.subr.mxu0 0.0
    %321 = vmatpush1.msra.mxu0 0.0
    %322 = vmatprep.subr.mxu0 0.0
    %323 = vmatpush1.msra.mxu0 0.0
    %324 = vmatprep.subr.mxu0 0.0
    %325 = vmatpush1.msra.mxu0 0.0
    %326 = vmatprep.subr.mxu0 0.0
    %327 = vmatpush1.msra.mxu0 0.0
    %328 = vmatprep.subr.mxu0 0.0
    %329 = vmatpush1.msra.mxu0 0.0
    %330 = vmatprep.subr.mxu0 0.0
    %331 = vmatpush1.msra.mxu0 0.0
    %332 = vmatprep.subr.mxu0 0.0
    %333 = vmatpush1.msra.mxu0 0.0
    %334 = vmatprep.subr.mxu0 0.0
    %335 = vmatpush1.msra.mxu0 0.0
    %336 = vmatprep.subr.mxu0 0.0
    %337 = vmatpush1.msra.mxu0 0.0
    %338 = vmatprep.subr.mxu0 0.0
    %339 = vmatpush1.msra.mxu0 0.0
    %340 = vmatprep.subr.mxu0 0.0
    %341 = vmatpush1.msra.mxu0 0.0
    %342 = vmatprep.subr.mxu0 0.0
    %343 = vmatpush1.msra.mxu0 0.0
    %344 = vmatprep.subr.mxu0 0.0
    %345 = vmatpush1.msra.mxu0 0.0
    %346 = vmatprep.subr.mxu0 0.0
    %347 = vmatpush1.msra.mxu0 0.0
    %348 = vmatprep.subr.mxu0 0.0
    %349 = vmatpush1.msra.mxu0 0.0
    %350 = vmatprep.mubr.f32.mxu0 0.0
    %351 = vmatmul.mubr.f32.gmra.mrb[0].mxu0 %v78
    %v352 = vpop.f32.mrb[0].mxu0
    %v353 = vadd.f32 %v72, %v352
    %v354 = vpop.f32.mrb[0].mxu0
    %355 = vmatprep.mubr.f32.mxu0 0.0
    %356 = vmatmul.mubr.f32.gmra.mrb[0].mxu0 %v81
    %v357 = vpop.f32.mrb[0].mxu0
    %v358 = vadd.f32 %v72, %v357
    %v359 = vpop.f32.mrb[0].mxu0
    %360 = vmatprep.mubr.f32.mxu0 0.0
    %361 = vmatmul.mubr.f32.gmra.mrb[0].mxu0 %v84
    %v362 = vpop.f32.mrb[0].mxu0
    %v363 = vadd.f32 %v72, %v362
    %v364 = vpop.f32.mrb[0].mxu0
    %365 = vmatprep.mubr.f32.mxu0 0.0
    %366 = vmatmul.mubr.f32.gmra.mrb[0].mxu0 %v87
    %v367 = vpop.f32.mrb[0].mxu0
    %v368 = vadd.f32 %v72, %v367
    %v369 = vpop.f32.mrb[0].mxu0
    %370 = vmatprep.mubr.f32.mxu0 0.0
    %371 = vmatmul.mubr.f32.gmra.mrb[0].mxu0 %v90
    %v372 = vpop.f32.mrb[0].mxu0
    %v373 = vadd.f32 %v72, %v372
    %v374 = vpop.f32.mrb[0].mxu0
    %375 = vmatprep.mubr.f32.mxu0 0.0
    %376 = vmatmul.mubr.f32.gmra.mrb[0].mxu0 %v93
    %v377 = vpop.f32.mrb[0].mxu0
    %v378 = vadd.f32 %v72, %v377
    %v379 = vpop.f32.mrb[0].mxu0
    %380 = vmatprep.mubr.f32.mxu0 0.0
    %381 = vmatmul.mubr.f32.gmra.mrb[0].mxu0 %v96
    %v382 = vpop.f32.mrb[0].mxu0
    %v383 = vadd.f32 %v72, %v382
    %v384 = vpop.f32.mrb[0].mxu0
    %385 = vmatprep.mubr.f32.mxu0 0.0
    %386 = vmatmul.mubr.f32.gmra.mrb[0].mxu0 %v99
    %v387 = vpop.f32.mrb[0].mxu0
    %v388 = vadd.f32 %v72, %v387
    %v389 = vpop.f32.mrb[0].mxu0
    %390 = vmatprep.mubr.f32.mxu0 0.0
    %391 = vmatmul.mubr.f32.gmra.mrb[0].mxu0 %v102
    %v392 = vpop.f32.mrb[0].mxu0
    %v393 = vadd.f32 %v72, %v392
    %v394 = vpop.f32.mrb[0].mxu0
    %395 = vmatprep.mubr.f32.mxu0 0.0
    %396 = vmatmul.mubr.f32.gmra.mrb[0].mxu0 %v105
    %v397 = vpop.f32.mrb[0].mxu0
    %v398 = vadd.f32 %v72, %v397
    %v399 = vpop.f32.mrb[0].mxu0
    %400 = vmatprep.mubr.f32.mxu0 0.0
    %401 = vmatmul.mubr.f32.gmra.mrb[0].mxu0 %v108
    %v402 = vpop.f32.mrb[0].mxu0
    %v403 = vadd.f32 %v72, %v402
    %v404 = vpop.f32.mrb[0].mxu0
    %405 = vmatprep.mubr.f32.mxu0 0.0
    %406 = vmatmul.mubr.f32.gmra.mrb[0].mxu0 %v111
    %v407 = vpop.f32.mrb[0].mxu0
    %v408 = vadd.f32 %v72, %v407
    %v409 = vpop.f32.mrb[0].mxu0
    %410 = vmatprep.mubr.f32.mxu0 0.0
    %411 = vmatmul.mubr.f32.gmra.mrb[0].mxu0 %v114
    %v412 = vpop.f32.mrb[0].mxu0
    %v413 = vadd.f32 %v72, %v412
    %v414 = vpop.f32.mrb[0].mxu0
    %415 = vmatprep.mubr.f32.mxu0 0.0
    %416 = vmatmul.mubr.f32.gmra.mrb[0].mxu0 %v117
    %v417 = vpop.f32.mrb[0].mxu0
    %v418 = vadd.f32 %v72, %v417
    %v419 = vpop.f32.mrb[0].mxu0
    %420 = vmatprep.mubr.f32.mxu0 0.0
    %421 = vmatmul.mubr.f32.gmra.mrb[0].mxu0 %v120
    %v422 = vpop.f32.mrb[0].mxu0
    %v423 = vadd.f32 %v72, %v422
    %v424 = vpop.f32.mrb[0].mxu0
    %425 = vmatprep.mubr.f32.mxu0 0.0
    %426 = vmatmul.mubr.f32.gmra.mrb[0].mxu0 %v123
    %v427 = vpop.f32.mrb[0].mxu0
    %v428 = vadd.f32 %v72, %v427
    %v429 = vpop.f32.mrb[0].mxu0
    %430 = vdwg.mxu0
    %v431 = vmax.f32 %v192, 0.0
    %v432 = vmax.f32 %v198, 0.0
    %v433 = vmax.f32 %v204, 0.0
    %v434 = vmax.f32 %v210, 0.0
    %v435 = vmax.f32 %v216, 0.0
    %v436 = vmax.f32 %v222, 0.0
    %v437 = vmax.f32 %v228, 0.0
    %v438 = vmax.f32 %v234, 0.0
    %v439 = vmax.f32 %v240, 0.0
    %v440 = vmax.f32 %v246, 0.0
    %v441 = vmax.f32 %v252, 0.0
    %v442 = vmax.f32 %v258, 0.0
    %v443 = vmax.f32 %v264, 0.0
    %v444 = vmax.f32 %v270, 0.0
    %v445 = vmax.f32 %v276, 0.0
    %v446 = vmax.f32 %v282, 0.0
    %447 = vst [vmem:[%s4] sm:$0xff] %v431
    %448 = vst [vmem:[%s4 + $0x18] sm:$0xff] %v432
    %449 = vst [vmem:[%s4 + $0x30] sm:$0xff] %v433
    %450 = vst [vmem:[%s4 + $0x48] sm:$0xff] %v434
    %451 = vst [vmem:[%s4 + $0x60] sm:$0xff] %v435
    %452 = vst [vmem:[%s4 + $0x78] sm:$0xff] %v436
    %453 = vst [vmem:[%s4 + $0x90] sm:$0xff] %v437
    %454 = vst [vmem:[%s4 + $0xa8] sm:$0xff] %v438
    %455 = vst [vmem:[%s4 + $0xc0] sm:$0xff] %v439
    %456 = vst [vmem:[%s4 + $0xd8] sm:$0xff] %v440
    %457 = vst [vmem:[%s4 + $0xf0] sm:$0xff] %v441
    %458 = vst [vmem:[%s4 + $0x108] sm:$0xff] %v442
    %459 = vst [vmem:[%s4 + $0x120] sm:$0xff] %v443
    %460 = vst [vmem:[%s4 + $0x138] sm:$0xff] %v444
    %461 = vst [vmem:[%s4 + $0x150] sm:$0xff] %v445
    %462 = vst [vmem:[%s4 + $0x168] sm:$0xff] %v446
    %v463 = vld [vmem:[#allocation2] sm:$0xff]
    %v464 = vld [vmem:[#allocation2 + $0x8] sm:$0xff]
    %v465 = vld [vmem:[#allocation2 + $0x10] sm:$0xff]
    %v466 = vld [vmem:[#allocation2 + $0x18] sm:$0xff]
    %v467 = vld [vmem:[#allocation2 + $0x20] sm:$0xff]
    %v468 = vld [vmem:[#allocation2 + $0x28] sm:$0xff]
    %v469 = vld [vmem:[#allocation2 + $0x30] sm:$0xff]
    %v470 = vld [vmem:[#allocation2 + $0x38] sm:$0xff]
    %v471 = vld [vmem:[#allocation2 + $0x40] sm:$0xff]
    %v472 = vld [vmem:[#allocation2 + $0x48] sm:$0xff]
    %v473 = vld [vmem:[#allocation2 + $0x50] sm:$0xff]
    %v474 = vld [vmem:[#allocation2 + $0x58] sm:$0xff]
    %v475 = vld [vmem:[#allocation2 + $0x60] sm:$0xff]
    %v476 = vld [vmem:[#allocation2 + $0x68] sm:$0xff]
    %v477 = vld [vmem:[#allocation2 + $0x70] sm:$0xff]
    %v478 = vld [vmem:[#allocation2 + $0x78] sm:$0xff]
    %479 = vmatprep.subr.mxu0 0.0
    %480 = vmatpush1.msra.mxu0 %v463
    %481 = vmatprep.subr.mxu0 0.0
    %482 = vmatpush1.msra.mxu0 %v464
    %483 = vmatprep.subr.mxu0 0.0
    %484 = vmatpush1.msra.mxu0 %v465
    %485 = vmatprep.subr.mxu0 0.0
    %486 = vmatpush1.msra.mxu0 %v466
    %487 = vmatprep.subr.mxu0 0.0
    %488 = vmatpush1.msra.mxu0 %v467
    %489 = vmatprep.subr.mxu0 0.0
    %490 = vmatpush1.msra.mxu0 %v468
    %491 = vmatprep.subr.mxu0 0.0
    %492 = vmatpush1.msra.mxu0 %v469
    %493 = vmatprep.subr.mxu0 0.0
    %494 = vmatpush1.msra.mxu0 %v470
    %495 = vmatprep.subr.mxu0 0.0
    %496 = vmatpush1.msra.mxu0 %v471
    %497 = vmatprep.subr.mxu0 0.0
    %498 = vmatpush1.msra.mxu0 %v472
    %499 = vmatprep.subr.mxu0 0.0
    %500 = vmatpush1.msra.mxu0 %v473
    %501 = vmatprep.subr.mxu0 0.0
    %502 = vmatpush1.msra.mxu0 %v474
    %503 = vmatprep.subr.mxu0 0.0
    %504 = vmatpush1.msra.mxu0 %v475
    %505 = vmatprep.subr.mxu0 0.0
    %506 = vmatpush1.msra.mxu0 %v476
    %507 = vmatprep.subr.mxu0 0.0
    %508 = vmatpush1.msra.mxu0 %v477
    %509 = vmatprep.subr.mxu0 0.0
    %510 = vmatpush1.msra.mxu0 %v478
    %511 = vmatprep.subr.mxu0 0.0
    %512 = vmatpush1.msra.mxu0 0.0
    %513 = vmatprep.subr.mxu0 0.0
    %514 = vmatpush1.msra.mxu0 0.0
    %515 = vmatprep.subr.mxu0 0.0
    %516 = vmatpush1.msra.mxu0 0.0
    %517 = vmatprep.subr.mxu0 0.0
    %518 = vmatpush1.msra.mxu0 0.0
    %519 = vmatprep.subr.mxu0 0.0
    %520 = vmatpush1.msra.mxu0 0.0
    %521 = vmatprep.subr.mxu0 0.0
    %522 = vmatpush1.msra.mxu0 0.0
    %523 = vmatprep.subr.mxu0 0.0
    %524 = vmatpush1.msra.mxu0 0.0
    %525 = vmatprep.subr.mxu0 0.0
    %526 = vmatpush1.msra.mxu0 0.0
    %527 = vmatprep.subr.mxu0 0.0
    %528 = vmatpush1.msra.mxu0 0.0
    %529 = vmatprep.subr.mxu0 0.0
    %530 = vmatpush1.msra.mxu0 0.0
    %531 = vmatprep.subr.mxu0 0.0
    %532 = vmatpush1.msra.mxu0 0.0
    %533 = vmatprep.subr.mxu0 0.0
    %534 = vmatpush1.msra.mxu0 0.0
    %535 = vmatprep.subr.mxu0 0.0
    %536 = vmatpush1.msra.mxu0 0.0
    %537 = vmatprep.subr.mxu0 0.0
    %538 = vmatpush1.msra.mxu0 0.0
    %539 = vmatprep.subr.mxu0 0.0
    %540 = vmatpush1.msra.mxu0 0.0
    %541 = vmatprep.subr.mxu0 0.0
    %542 = vmatpush1.msra.mxu0 0.0
    %543 = vmatprep.mubr.f32.mxu0 0.0
    %544 = vmatmul.mubr.f32.gmra.mrb[0].mxu0 %v431
    %v545 = vpop.f32.mrb[0].mxu0
    %v546 = vadd.f32 %v194, %v545
    %v547 = vpop.f32.mrb[0].mxu0
    %548 = vmatprep.mubr.f32.mxu0 0.0
    %549 = vmatmul.mubr.f32.gmra.mrb[0].mxu0 %v432
    %v550 = vpop.f32.mrb[0].mxu0
    %v551 = vadd.f32 %v200, %v550
    %v552 = vpop.f32.mrb[0].mxu0
    %553 = vmatprep.mubr.f32.mxu0 0.0
    %554 = vmatmul.mubr.f32.gmra.mrb[0].mxu0 %v433
    %v555 = vpop.f32.mrb[0].mxu0
    %v556 = vadd.f32 %v206, %v555
    %v557 = vpop.f32.mrb[0].mxu0
    %558 = vmatprep.mubr.f32.mxu0 0.0
    %559 = vmatmul.mubr.f32.gmra.mrb[0].mxu0 %v434
    %v560 = vpop.f32.mrb[0].mxu0
    %v561 = vadd.f32 %v212, %v560
    %v562 = vpop.f32.mrb[0].mxu0
    %563 = vmatprep.mubr.f32.mxu0 0.0
    %564 = vmatmul.mubr.f32.gmra.mrb[0].mxu0 %v435
    %v565 = vpop.f32.mrb[0].mxu0
    %v566 = vadd.f32 %v218, %v565
    %v567 = vpop.f32.mrb[0].mxu0
    %568 = vmatprep.mubr.f32.mxu0 0.0
    %569 = vmatmul.mubr.f32.gmra.mrb[0].mxu0 %v436
    %v570 = vpop.f32.mrb[0].mxu0
    %v571 = vadd.f32 %v224, %v570
    %v572 = vpop.f32.mrb[0].mxu0
    %573 = vmatprep.mubr.f32.mxu0 0.0
    %574 = vmatmul.mubr.f32.gmra.mrb[0].mxu0 %v437
    %v575 = vpop.f32.mrb[0].mxu0
    %v576 = vadd.f32 %v230, %v575
    %v577 = vpop.f32.mrb[0].mxu0
    %578 = vmatprep.mubr.f32.mxu0 0.0
    %579 = vmatmul.mubr.f32.gmra.mrb[0].mxu0 %v438
    %v580 = vpop.f32.mrb[0].mxu0
    %v581 = vadd.f32 %v236, %v580
    %v582 = vpop.f32.mrb[0].mxu0
    %583 = vmatprep.mubr.f32.mxu0 0.0
    %584 = vmatmul.mubr.f32.gmra.mrb[0].mxu0 %v439
    %v585 = vpop.f32.mrb[0].mxu0
    %v586 = vadd.f32 %v242, %v585
    %v587 = vpop.f32.mrb[0].mxu0
    %588 = vmatprep.mubr.f32.mxu0 0.0
    %589 = vmatmul.mubr.f32.gmra.mrb[0].mxu0 %v440
    %v590 = vpop.f32.mrb[0].mxu0
    %v591 = vadd.f32 %v248, %v590
    %v592 = vpop.f32.mrb[0].mxu0
    %593 = vmatprep.mubr.f32.mxu0 0.0
    %594 = vmatmul.mubr.f32.gmra.mrb[0].mxu0 %v441
    %v595 = vpop.f32.mrb[0].mxu0
    %v596 = vadd.f32 %v254, %v595
    %v597 = vpop.f32.mrb[0].mxu0
    %598 = vmatprep.mubr.f32.mxu0 0.0
    %599 = vmatmul.mubr.f32.gmra.mrb[0].mxu0 %v442
    %v600 = vpop.f32.mrb[0].mxu0
    %v601 = vadd.f32 %v260, %v600
    %v602 = vpop.f32.mrb[0].mxu0
    %603 = vmatprep.mubr.f32.mxu0 0.0
    %604 = vmatmul.mubr.f32.gmra.mrb[0].mxu0 %v443
    %v605 = vpop.f32.mrb[0].mxu0
    %v606 = vadd.f32 %v266, %v605
    %v607 = vpop.f32.mrb[0].mxu0
    %608 = vmatprep.mubr.f32.mxu0 0.0
    %609 = vmatmul.mubr.f32.gmra.mrb[0].mxu0 %v444
    %v610 = vpop.f32.mrb[0].mxu0
    %v611 = vadd.f32 %v272, %v610
    %v612 = vpop.f32.mrb[0].mxu0
    %613 = vmatprep.mubr.f32.mxu0 0.0
    %614 = vmatmul.mubr.f32.gmra.mrb[0].mxu0 %v445
    %v615 = vpop.f32.mrb[0].mxu0
    %v616 = vadd.f32 %v278, %v615
    %v617 = vpop.f32.mrb[0].mxu0
    %618 = vmatprep.mubr.f32.mxu0 0.0
    %619 = vmatmul.mubr.f32.gmra.mrb[0].mxu0 %v446
    %v620 = vpop.f32.mrb[0].mxu0
    %v621 = vadd.f32 %v284, %v620
    %v622 = vpop.f32.mrb[0].mxu0
    %623 = vdwg.mxu0
    %v624 = vmax.f32 %v546, 0.0
    %v625 = vmax.f32 %v551, 0.0
    %v626 = vmax.f32 %v556, 0.0
    %v627 = vmax.f32 %v561, 0.0
    %v628 = vmax.f32 %v566, 0.0
    %v629 = vmax.f32 %v571, 0.0
    %v630 = vmax.f32 %v576, 0.0
    %v631 = vmax.f32 %v581, 0.0
    %v632 = vmax.f32 %v586, 0.0
    %v633 = vmax.f32 %v591, 0.0
    %v634 = vmax.f32 %v596, 0.0
    %v635 = vmax.f32 %v601, 0.0
    %v636 = vmax.f32 %v606, 0.0
    %v637 = vmax.f32 %v611, 0.0
    %v638 = vmax.f32 %v616, 0.0
    %v639 = vmax.f32 %v621, 0.0
    %640 = vst [vmem:[%s4 + $0x8] sm:$0xff] %v624
    %641 = vst [vmem:[%s4 + $0x20] sm:$0xff] %v625
    %642 = vst [vmem:[%s4 + $0x38] sm:$0xff] %v626
    %643 = vst [vmem:[%s4 + $0x50] sm:$0xff] %v627
    %644 = vst [vmem:[%s4 + $0x68] sm:$0xff] %v628
    %645 = vst [vmem:[%s4 + $0x80] sm:$0xff] %v629
    %646 = vst [vmem:[%s4 + $0x98] sm:$0xff] %v630
    %647 = vst [vmem:[%s4 + $0xb0] sm:$0xff] %v631
    %648 = vst [vmem:[%s4 + $0xc8] sm:$0xff] %v632
    %649 = vst [vmem:[%s4 + $0xe0] sm:$0xff] %v633
    %650 = vst [vmem:[%s4 + $0xf8] sm:$0xff] %v634
    %651 = vst [vmem:[%s4 + $0x110] sm:$0xff] %v635
    %652 = vst [vmem:[%s4 + $0x128] sm:$0xff] %v636
    %653 = vst [vmem:[%s4 + $0x140] sm:$0xff] %v637
    %654 = vst [vmem:[%s4 + $0x158] sm:$0xff] %v638
    %655 = vst [vmem:[%s4 + $0x170] sm:$0xff] %v639
    %s656 = scalar_lea.vmem [#allocation2], 128
    %v657 = vld [vmem:[%s656] sm:$0xff]
    %v658 = vld [vmem:[%s656 + $0x8] sm:$0xff]
    %v659 = vld [vmem:[%s656 + $0x10] sm:$0xff]
    %v660 = vld [vmem:[%s656 + $0x18] sm:$0xff]
    %v661 = vld [vmem:[%s656 + $0x20] sm:$0xff]
    %v662 = vld [vmem:[%s656 + $0x28] sm:$0xff]
    %v663 = vld [vmem:[%s656 + $0x30] sm:$0xff]
    %v664 = vld [vmem:[%s656 + $0x38] sm:$0xff]
    %v665 = vld [vmem:[%s656 + $0x40] sm:$0xff]
    %v666 = vld [vmem:[%s656 + $0x48] sm:$0xff]
    %v667 = vld [vmem:[%s656 + $0x50] sm:$0xff]
    %v668 = vld [vmem:[%s656 + $0x58] sm:$0xff]
    %v669 = vld [vmem:[%s656 + $0x60] sm:$0xff]
    %v670 = vld [vmem:[%s656 + $0x68] sm:$0xff]
    %v671 = vld [vmem:[%s656 + $0x70] sm:$0xff]
    %v672 = vld [vmem:[%s656 + $0x78] sm:$0xff]
    %673 = vmatprep.subr.mxu0 0.0
    %674 = vmatpush1.msra.mxu0 %v657
    %675 = vmatprep.subr.mxu0 0.0
    %676 = vmatpush1.msra.mxu0 %v658
    %677 = vmatprep.subr.mxu0 0.0
    %678 = vmatpush1.msra.mxu0 %v659
    %679 = vmatprep.subr.mxu0 0.0
    %680 = vmatpush1.msra.mxu0 %v660
    %681 = vmatprep.subr.mxu0 0.0
    %682 = vmatpush1.msra.mxu0 %v661
    %683 = vmatprep.subr.mxu0 0.0
    %684 = vmatpush1.msra.mxu0 %v662
    %685 = vmatprep.subr.mxu0 0.0
    %686 = vmatpush1.msra.mxu0 %v663
    %687 = vmatprep.subr.mxu0 0.0
    %688 = vmatpush1.msra.mxu0 %v664
    %689 = vmatprep.subr.mxu0 0.0
    %690 = vmatpush1.msra.mxu0 %v665
    %691 = vmatprep.subr.mxu0 0.0
    %692 = vmatpush1.msra.mxu0 %v666
    %693 = vmatprep.subr.mxu0 0.0
    %694 = vmatpush1.msra.mxu0 %v667
    %695 = vmatprep.subr.mxu0 0.0
    %696 = vmatpush1.msra.mxu0 %v668
    %697 = vmatprep.subr.mxu0 0.0
    %698 = vmatpush1.msra.mxu0 %v669
    %699 = vmatprep.subr.mxu0 0.0
    %700 = vmatpush1.msra.mxu0 %v670
    %701 = vmatprep.subr.mxu0 0.0
    %702 = vmatpush1.msra.mxu0 %v671
    %703 = vmatprep.subr.mxu0 0.0
    %704 = vmatpush1.msra.mxu0 %v672
    %705 = vmatprep.subr.mxu0 0.0
    %706 = vmatpush1.msra.mxu0 0.0
    %707 = vmatprep.subr.mxu0 0.0
    %708 = vmatpush1.msra.mxu0 0.0
    %709 = vmatprep.subr.mxu0 0.0
    %710 = vmatpush1.msra.mxu0 0.0
    %711 = vmatprep.subr.mxu0 0.0
    %712 = vmatpush1.msra.mxu0 0.0
    %713 = vmatprep.subr.mxu0 0.0
    %714 = vmatpush1.msra.mxu0 0.0
    %715 = vmatprep.subr.mxu0 0.0
    %716 = vmatpush1.msra.mxu0 0.0
    %717 = vmatprep.subr.mxu0 0.0
    %718 = vmatpush1.msra.mxu0 0.0
    %719 = vmatprep.subr.mxu0 0.0
    %720 = vmatpush1.msra.mxu0 0.0
    %721 = vmatprep.subr.mxu0 0.0
    %722 = vmatpush1.msra.mxu0 0.0
    %723 = vmatprep.subr.mxu0 0.0
    %724 = vmatpush1.msra.mxu0 0.0
    %725 = vmatprep.subr.mxu0 0.0
    %726 = vmatpush1.msra.mxu0 0.0
    %727 = vmatprep.subr.mxu0 0.0
    %728 = vmatpush1.msra.mxu0 0.0
    %729 = vmatprep.subr.mxu0 0.0
    %730 = vmatpush1.msra.mxu0 0.0
    %731 = vmatprep.subr.mxu0 0.0
    %732 = vmatpush1.msra.mxu0 0.0
    %733 = vmatprep.subr.mxu0 0.0
    %734 = vmatpush1.msra.mxu0 0.0
    %735 = vmatprep.subr.mxu0 0.0
    %736 = vmatpush1.msra.mxu0 0.0
    %737 = vmatprep.mubr.f32.mxu0 0.0
    %738 = vmatmul.mubr.f32.gmra.mrb[0].mxu0 %v624
    %v739 = vpop.f32.mrb[0].mxu0
    %v740 = vadd.f32 %v353, %v739
    %v741 = vpop.f32.mrb[0].mxu0
    %742 = vmatprep.mubr.f32.mxu0 0.0
    %743 = vmatmul.mubr.f32.gmra.mrb[0].mxu0 %v625
    %v744 = vpop.f32.mrb[0].mxu0
    %v745 = vadd.f32 %v358, %v744
    %v746 = vpop.f32.mrb[0].mxu0
    %747 = vmatprep.mubr.f32.mxu0 0.0
    %748 = vmatmul.mubr.f32.gmra.mrb[0].mxu0 %v626
    %v749 = vpop.f32.mrb[0].mxu0
    %v750 = vadd.f32 %v363, %v749
    %v751 = vpop.f32.mrb[0].mxu0
    %752 = vmatprep.mubr.f32.mxu0 0.0
    %753 = vmatmul.mubr.f32.gmra.mrb[0].mxu0 %v627
    %v754 = vpop.f32.mrb[0].mxu0
    %v755 = vadd.f32 %v368, %v754
    %v756 = vpop.f32.mrb[0].mxu0
    %757 = vmatprep.mubr.f32.mxu0 0.0
    %758 = vmatmul.mubr.f32.gmra.mrb[0].mxu0 %v628
    %v759 = vpop.f32.mrb[0].mxu0
    %v760 = vadd.f32 %v373, %v759
    %v761 = vpop.f32.mrb[0].mxu0
    %762 = vmatprep.mubr.f32.mxu0 0.0
    %763 = vmatmul.mubr.f32.gmra.mrb[0].mxu0 %v629
    %v764 = vpop.f32.mrb[0].mxu0
    %v765 = vadd.f32 %v378, %v764
    %v766 = vpop.f32.mrb[0].mxu0
    %767 = vmatprep.mubr.f32.mxu0 0.0
    %768 = vmatmul.mubr.f32.gmra.mrb[0].mxu0 %v630
    %v769 = vpop.f32.mrb[0].mxu0
    %v770 = vadd.f32 %v383, %v769
    %v771 = vpop.f32.mrb[0].mxu0
    %772 = vmatprep.mubr.f32.mxu0 0.0
    %773 = vmatmul.mubr.f32.gmra.mrb[0].mxu0 %v631
    %v774 = vpop.f32.mrb[0].mxu0
    %v775 = vadd.f32 %v388, %v774
    %v776 = vpop.f32.mrb[0].mxu0
    %777 = vmatprep.mubr.f32.mxu0 0.0
    %778 = vmatmul.mubr.f32.gmra.mrb[0].mxu0 %v632
    %v779 = vpop.f32.mrb[0].mxu0
    %v780 = vadd.f32 %v393, %v779
    %v781 = vpop.f32.mrb[0].mxu0
    %782 = vmatprep.mubr.f32.mxu0 0.0
    %783 = vmatmul.mubr.f32.gmra.mrb[0].mxu0 %v633
    %v784 = vpop.f32.mrb[0].mxu0
    %v785 = vadd.f32 %v398, %v784
    %v786 = vpop.f32.mrb[0].mxu0
    %787 = vmatprep.mubr.f32.mxu0 0.0
    %788 = vmatmul.mubr.f32.gmra.mrb[0].mxu0 %v634
    %v789 = vpop.f32.mrb[0].mxu0
    %v790 = vadd.f32 %v403, %v789
    %v791 = vpop.f32.mrb[0].mxu0
    %792 = vmatprep.mubr.f32.mxu0 0.0
    %793 = vmatmul.mubr.f32.gmra.mrb[0].mxu0 %v635
    %v794 = vpop.f32.mrb[0].mxu0
    %v795 = vadd.f32 %v408, %v794
    %v796 = vpop.f32.mrb[0].mxu0
    %797 = vmatprep.mubr.f32.mxu0 0.0
    %798 = vmatmul.mubr.f32.gmra.mrb[0].mxu0 %v636
    %v799 = vpop.f32.mrb[0].mxu0
    %v800 = vadd.f32 %v413, %v799
    %v801 = vpop.f32.mrb[0].mxu0
    %802 = vmatprep.mubr.f32.mxu0 0.0
    %803 = vmatmul.mubr.f32.gmra.mrb[0].mxu0 %v637
    %v804 = vpop.f32.mrb[0].mxu0
    %v805 = vadd.f32 %v418, %v804
    %v806 = vpop.f32.mrb[0].mxu0
    %807 = vmatprep.mubr.f32.mxu0 0.0
    %808 = vmatmul.mubr.f32.gmra.mrb[0].mxu0 %v638
    %v809 = vpop.f32.mrb[0].mxu0
    %v810 = vadd.f32 %v423, %v809
    %v811 = vpop.f32.mrb[0].mxu0
    %812 = vmatprep.mubr.f32.mxu0 0.0
    %813 = vmatmul.mubr.f32.gmra.mrb[0].mxu0 %v639
    %v814 = vpop.f32.mrb[0].mxu0
    %v815 = vadd.f32 %v428, %v814
    %v816 = vpop.f32.mrb[0].mxu0
    %817 = vdwg.mxu0
    %v818 = vmax.f32 %v740, 0.0
    %v819 = vmax.f32 %v745, 0.0
    %v820 = vmax.f32 %v750, 0.0
    %v821 = vmax.f32 %v755, 0.0
    %v822 = vmax.f32 %v760, 0.0
    %v823 = vmax.f32 %v765, 0.0
    %v824 = vmax.f32 %v770, 0.0
    %v825 = vmax.f32 %v775, 0.0
    %v826 = vmax.f32 %v780, 0.0
    %v827 = vmax.f32 %v785, 0.0
    %v828 = vmax.f32 %v790, 0.0
    %v829 = vmax.f32 %v795, 0.0
    %v830 = vmax.f32 %v800, 0.0
    %v831 = vmax.f32 %v805, 0.0
    %v832 = vmax.f32 %v810, 0.0
    %v833 = vmax.f32 %v815, 0.0
    %834 = vst [vmem:[%s4 + $0x10] sm:$0xff] %v818
    %835 = vst [vmem:[%s4 + $0x28] sm:$0xff] %v819
    %836 = vst [vmem:[%s4 + $0x40] sm:$0xff] %v820
    %837 = vst [vmem:[%s4 + $0x58] sm:$0xff] %v821
    %838 = vst [vmem:[%s4 + $0x70] sm:$0xff] %v822
    %839 = vst [vmem:[%s4 + $0x88] sm:$0xff] %v823
    %840 = vst [vmem:[%s4 + $0xa0] sm:$0xff] %v824
    %841 = vst [vmem:[%s4 + $0xb8] sm:$0xff] %v825
    %842 = vst [vmem:[%s4 + $0xd0] sm:$0xff] %v826
    %843 = vst [vmem:[%s4 + $0xe8] sm:$0xff] %v827
    %844 = vst [vmem:[%s4 + $0x100] sm:$0xff] %v828
    %845 = vst [vmem:[%s4 + $0x118] sm:$0xff] %v829
    %846 = vst [vmem:[%s4 + $0x130] sm:$0xff] %v830
    %847 = vst [vmem:[%s4 + $0x148] sm:$0xff] %v831
    %848 = vst [vmem:[%s4 + $0x160] sm:$0xff] %v832
    %849 = vst [vmem:[%s4 + $0x178] sm:$0xff] %v833
    // Predicated region
    $region22: #{modulator_forward_packed.1} parent=1 // pred_check
      _
    $region23: #{modulator_forward_packed.1} parent=1 // pred_check_branch
      %851 = sbr.rel (0) target = $region25
    $region24: #{modulator_forward_packed.1} parent=1 // pred_region
      _
    $region25: #{modulator_forward_packed.1} parent=1 // pred_fallthru
      _
    // Predicated region
    $region26: #{modulator_forward_packed.1} parent=1 // pred_check
      _
    $region27: #{modulator_forward_packed.1} parent=1 // pred_check_branch
      %853 = sbr.rel (0) target = $region29
    $region28: #{modulator_forward_packed.1} parent=1 // pred_region
      _
    $region29: #{modulator_forward_packed.1} parent=1 // pred_fallthru
      _
    %854 = vsyncpa [#allocation3], 1

</llo_original>
